<compile_context>
chip_gen: v7x
topology: tpu7x:2x2x1
jax: 0.10.0
libtpu: 0.0.40
codegen_flags: <defaults>
</compile_context>

<pallas_src>
import functools

import jax
import jax.numpy as jnp
from jax.experimental import pallas as pl
from jax.experimental.pallas import tpu as pltpu


def _embed_kernel(x_ref, w_ref, posb_ref, o_ref):
    """One (batch-block, token-tile) grid step.

    x_ref:    (bb, tn, K)  patch pixels (token row 0 is the zero cls placeholder),
                           compute dtype (bf16)
    w_ref:    (K, H)       projection weight (compute dtype), resident for the grid
    posb_ref: (Nt, H)      f32 position embeddings (+conv bias folded into patch rows,
                           cls token folded into row 0), resident for the grid
    o_ref:    (bb, tn, H)  output tile (aligned dense stores)
    """
    bb, tn, _ = x_ref.shape
    t = pl.program_id(1)

    if tn == posb_ref.shape[0]:
        # Single token tile: the resident pos-emb block is exactly this tile.
        pos = posb_ref[...]
    else:
        # Tiled path: tn is always a multiple of 8 here (see _token_tiling).
        off = pl.multiple_of(t * tn, 8)
        pos = posb_ref[pl.ds(off, tn), :]

    w = w_ref[...]

    # Small static loop over the batch block: each iteration is one MXU matmul
    # (bf16 operands, f32 accumulation) followed by an aligned (tn, H) store.
    for i in range(bb):
        acc = jnp.dot(x_ref[i], w, preferred_element_type=jnp.float32)
        o_ref[i] = (acc + pos).astype(o_ref.dtype)


def _token_tiling(n_tokens, max_tile):
    """Return (token_tile, padded_token_count)."""
    if n_tokens <= max_tile:
        return n_tokens, n_tokens                      # single full-token block
    t = (max_tile // 8) * 8
    while t >= 8:
        if n_tokens % t == 0:
            return t, n_tokens                         # exact multiple-of-8 divisor
        t -= 8
    t = (max_tile // 8) * 8                            # no divisor: pad wrapper-side
    return t, ((n_tokens + t - 1) // t) * t


def _batch_block(batch, max_block):
    bb = max(min(batch, max_block), 1)
    while batch % bb:
        bb -= 1
    return bb


def patch_embed_pallas(tokens, w_kh, posb, *, out_dtype, token_tile, batch_block):
    """tokens: (B, Nt, K), w_kh: (K, H), posb: (Nt, H) -> (B, Nt, H)."""
    B, Nt, K = tokens.shape
    H = w_kh.shape[1]
    tn, bb = token_tile, batch_block
    assert Nt % tn == 0 and B % bb == 0, (Nt, tn, B, bb)

    # Generation-aware VMEM budget: actual tile footprint (+margin), clamped to
    # ~80% of the physical per-core VMEM (64 MiB on v7x, 128 MiB on v5e/v6e).
    in_bytes = jnp.dtype(tokens.dtype).itemsize
    out_bytes = jnp.dtype(out_dtype).itemsize
    need = (2 * bb * tn * K * in_bytes          # double-buffered patch tiles
            + 2 * bb * tn * H * out_bytes       # double-buffered output tiles
            + K * H * in_bytes                  # resident weight
            + Nt * H * 4)                       # resident pos-emb (f32)
    try:
        vmem_cap = int(pltpu.get_tpu_info().vmem_capacity_bytes)
    except Exception:
        vmem_cap = 64 * 1024 * 1024
    vmem_limit = min(max(int(need * 1.5) + (4 << 20), 16 << 20),
                     int(0.8 * vmem_cap))

    return pl.pallas_call(
        _embed_kernel,
        out_shape=jax.ShapeDtypeStruct((B, Nt, H), out_dtype),
        grid_spec=pltpu.PrefetchScalarGridSpec(
            num_scalar_prefetch=0,
            grid=(B // bb, Nt // tn),
            in_specs=[
                pl.BlockSpec((bb, tn, K), lambda b, t: (b, t, 0)),  # patch tile
                pl.BlockSpec((K, H), lambda b, t: (0, 0)),          # weight (resident)
                pl.BlockSpec((Nt, H), lambda b, t: (0, 0)),         # pos-emb (resident)
            ],
            out_specs=pl.BlockSpec((bb, tn, H), lambda b, t: (b, t, 0)),
        ),
        compiler_params=pltpu.CompilerParams(
            dimension_semantics=("parallel", "parallel"),
            vmem_limit_bytes=vmem_limit,
        ),
    )(tokens, w_kh, posb)


def embeddings_forward(x, conv_w, conv_b, cls_token, pos_emb, patch_size=(16, 16),
                       *, compute_dtype=jnp.bfloat16, out_dtype=None,
                       max_token_tile=512, max_batch_block=8):
    """Full Embeddings.forward (non-hybrid, eval-mode dropout).

    x:         (B, C, H, W)   NCHW, like PyTorch
    conv_w:    (hidden, C, ph, pw)
    conv_b:    (hidden,)
    cls_token: (1, 1, hidden)
    pos_emb:   (1, n_patches + 1, hidden)
    """
    B, C, Himg, Wimg = x.shape
    ph, pw = patch_size
    gh, gw = Himg // ph, Wimg // pw
    N = gh * gw
    hidden = conv_w.shape[0]
    K = C * ph * pw
    N1 = N + 1
    out_dtype = x.dtype if out_dtype is None else out_dtype

    # Patch extraction (im2col for the stride==kernel conv) plus a leading zero
    # row standing in for the cls-token position; emitted in the bf16 compute
    # dtype so the materialized intermediate is half size.
    # TODO(synk): for peak HBM efficiency, move this reorder into the kernel
    # (keep x in HBM via memory_space=pl.ANY + manual DMA) instead of
    # materializing the (B, N+1, K) intermediate.
    patches = x.reshape(B, C, gh, ph, gw, pw)
    patches = patches.transpose(0, 2, 4, 1, 3, 5).reshape(B, N, K)
    tokens = jnp.pad(patches, ((0, 0), (1, 0), (0, 0))).astype(compute_dtype)   # (B, N+1, K)

    # Weight as (K, H): canonical weight-stationary MXU layout (no trans_b).
    # TODO(synk): in a real model do this reshape/transpose/cast once at parameter-load time.
    w_kh = conv_w.reshape(hidden, K).T.astype(compute_dtype)                    # (K, hidden)

    # Position embeddings with the conv bias folded into the patch rows and the
    # cls token folded into row 0 (row 0 of `tokens` is all-zero, so
    # 0 @ W + posb[0] == cls_token + pos_emb[0]).
    posb = jnp.concatenate(
        [cls_token[0] + pos_emb[0, 0:1, :],
         pos_emb[0, 1:, :] + conv_b[None, :]], axis=0).astype(jnp.float32)      # (N+1, hidden)

    tn, Nt = _token_tiling(N1, max_token_tile)
    bb = _batch_block(B, max_batch_block)
    if Nt != N1:
        tokens = jnp.pad(tokens, ((0, 0), (0, Nt - N1), (0, 0)))
        posb = jnp.pad(posb, ((0, Nt - N1), (0, 0)))

    out = patch_embed_pallas(tokens, w_kh, posb, out_dtype=out_dtype,
                             token_tile=tn, batch_block=bb)
    if Nt != N1:
        # TODO(synk): this slice copies; keep the padded layout if the downstream
        # consumer tolerates it (or fuse the slice into the consumer).
        out = out[:, :N1, :]
    # TODO(synk): Dropout is identity in eval mode; training-mode dropout not implemented.
    return out


def _reference(x, conv_w, conv_b, cls_token, pos_emb, patch_size, *, compute_dtype):
    """Pure-JAX reference (lax.conv) using the same bf16-operand / f32-accum recipe."""
    B = x.shape[0]
    hidden = conv_w.shape[0]
    y = jax.lax.conv_general_dilated(
        x.astype(compute_dtype), conv_w.astype(compute_dtype),
        window_strides=patch_size, padding="VALID",
        dimension_numbers=("NCHW", "OIHW", "NCHW"),
        preferred_element_type=jnp.float32)
    y = y + conv_b.reshape(1, hidden, 1, 1)
    y = y.reshape(B, hidden, -1).transpose(0, 2, 1)          # (B, N, hidden)
    cls = jnp.broadcast_to(cls_token, (B, 1, hidden))
    y = jnp.concatenate([cls, y], axis=1) + pos_emb
    return y.astype(x.dtype)


if __name__ == "__main__":
    key = jax.random.PRNGKey(0)
    k1, k2, k3, k4, k5 = jax.random.split(key, 5)

    # Small, forward-consistent shapes: img 16x16, 4 channels, patch 4x4,
    # hidden 32 -> n_patches = 16, seq = 17.
    B, C, Himg, Wimg = 2, 4, 16, 16
    patch_size = (4, 4)
    hidden = 32
    n_patches = (Himg // patch_size[0]) * (Wimg // patch_size[1])

    x = jax.random.normal(k1, (B, C, Himg, Wimg), dtype=jnp.float32)
    conv_w = 0.05 * jax.random.normal(k2, (hidden, C, patch_size[0], patch_size[1]), jnp.float32)
    conv_b = 0.05 * jax.random.normal(k3, (hidden,), jnp.float32)
    cls_token = 0.02 * jax.random.normal(k4, (1, 1, hidden), jnp.float32)
    pos_emb = 0.02 * jax.random.normal(k5, (1, n_patches + 1, hidden), jnp.float32)

    ref = _reference(x, conv_w, conv_b, cls_token, pos_emb, patch_size,
                     compute_dtype=jnp.bfloat16)

    # 1) Default config: batch-blocked, single full-token tile per step.
    fwd = jax.jit(functools.partial(embeddings_forward, patch_size=patch_size))
    out = jax.block_until_ready(fwd(x, conv_w, conv_b, cls_token, pos_emb))
    assert out.shape == (B, n_patches + 1, hidden), out.shape
    assert out.dtype == x.dtype, out.dtype
    assert jnp.allclose(out, ref, atol=2e-3, rtol=2e-3), float(jnp.max(jnp.abs(out - ref)))

    # 2) Forced tiny token tile: exercises the multi-tile + wrapper-padding path.
    fwd_tiled = jax.jit(functools.partial(embeddings_forward, patch_size=patch_size,
                                          max_token_tile=8, max_batch_block=1))
    out_t = jax.block_until_ready(fwd_tiled(x, conv_w, conv_b, cls_token, pos_emb))
    assert out_t.shape == (B, n_patches + 1, hidden), out_t.shape
    assert jnp.allclose(out_t, ref, atol=2e-3, rtol=2e-3), float(jnp.max(jnp.abs(out_t - ref)))

    print("KERNEL_OK")
</pallas_src>

<mosaic_0001>
module attributes {stable_mosaic.version = 11 : i64} {
  func.func @_embed_kernel(%arg0: i32, %arg1: i32, %arg2: memref<2x17x64xbf16, #tpu.memory_space<vmem>>, %arg3: memref<64x32xbf16, #tpu.memory_space<vmem>>, %arg4: memref<17x32xf32, #tpu.memory_space<vmem>>, %arg5: memref<2x17x32xf32, #tpu.memory_space<vmem>>) attributes {dimension_semantics = [#tpu.dimension_semantics<parallel>, #tpu.dimension_semantics<parallel>], iteration_bounds = array<i64: 1, 1>, scalar_prefetch = 0 : i64, scratch_operands = 0 : i64, tpu.core_type = #tpu.core_type<tc>, window_params = [{transform_indices = @transform_0, window_bounds = array<i64: 2, 17, 64>}, {pipeline_mode = #tpu.pipeline_mode<synchronous>, transform_indices = @transform_1, window_bounds = array<i64: 64, 32>}, {pipeline_mode = #tpu.pipeline_mode<synchronous>, transform_indices = @transform_2, window_bounds = array<i64: 17, 32>}, {transform_indices = @transform_3, window_bounds = array<i64: 2, 17, 32>}]} {
    %c0 = arith.constant 0 : index
    %c0_0 = arith.constant 0 : index
    %0 = vector.load %arg4[%c0, %c0_0] : memref<17x32xf32, #tpu.memory_space<vmem>>, vector<17x32xf32>
    %c0_1 = arith.constant 0 : index
    %c0_2 = arith.constant 0 : index
    %1 = vector.load %arg3[%c0_1, %c0_2] : memref<64x32xbf16, #tpu.memory_space<vmem>>, vector<64x32xbf16>
    %c0_3 = arith.constant 0 : index
    %c0_4 = arith.constant 0 : index
    %c0_5 = arith.constant 0 : index
    %2 = vector.load %arg2[%c0_3, %c0_4, %c0_5] : memref<2x17x64xbf16, #tpu.memory_space<vmem>>, vector<1x17x64xbf16>
    %3 = vector.shape_cast %2 : vector<1x17x64xbf16> to vector<17x64xbf16>
    %cst = arith.constant dense<0.000000e+00> : vector<17x32xf32>
    %4 = tpu.matmul %3, %1, %cst {dimension_numbers = #tpu.dot_dimension_numbers<[1], [0], [0], [1], [0, 0, 1, 1], [], []>} : vector<17x64xbf16>, vector<64x32xbf16>, vector<17x32xf32> -> vector<17x32xf32>
    %5 = arith.addf %4, %0 : vector<17x32xf32>
    %c0_6 = arith.constant 0 : index
    %c0_7 = arith.constant 0 : index
    %c0_8 = arith.constant 0 : index
    %6 = vector.load %arg5[%c0_6, %c0_7, %c0_8] : memref<2x17x32xf32, #tpu.memory_space<vmem>>, vector<1x17x32xf32>
    %7 = vector.shape_cast %6 : vector<1x17x32xf32> to vector<17x32xf32>
    %8 = vector.shape_cast %5 : vector<17x32xf32> to vector<1x17x32xf32>
    tpu.vector_store %arg5[%c0_6, %c0_7, %c0_8], %8 {strides = array<i32>} : memref<2x17x32xf32, #tpu.memory_space<vmem>>, vector<1x17x32xf32>,
    %c1 = arith.constant 1 : index
    %c0_9 = arith.constant 0 : index
    %c0_10 = arith.constant 0 : index
    %9 = vector.load %arg2[%c1, %c0_9, %c0_10] : memref<2x17x64xbf16, #tpu.memory_space<vmem>>, vector<1x17x64xbf16>
    %10 = vector.shape_cast %9 : vector<1x17x64xbf16> to vector<17x64xbf16>
    %cst_11 = arith.constant dense<0.000000e+00> : vector<17x32xf32>
    %11 = tpu.matmul %10, %1, %cst_11 {dimension_numbers = #tpu.dot_dimension_numbers<[1], [0], [0], [1], [0, 0, 1, 1], [], []>} : vector<17x64xbf16>, vector<64x32xbf16>, vector<17x32xf32> -> vector<17x32xf32>
    %12 = arith.addf %11, %0 : vector<17x32xf32>
    %c1_12 = arith.constant 1 : index
    %c0_13 = arith.constant 0 : index
    %c0_14 = arith.constant 0 : index
    %13 = vector.load %arg5[%c1_12, %c0_13, %c0_14] : memref<2x17x32xf32, #tpu.memory_space<vmem>>, vector<1x17x32xf32>
    %14 = vector.shape_cast %13 : vector<1x17x32xf32> to vector<17x32xf32>
    %15 = vector.shape_cast %12 : vector<17x32xf32> to vector<1x17x32xf32>
    tpu.vector_store %arg5[%c1_12, %c0_13, %c0_14], %15 {strides = array<i32>} : memref<2x17x32xf32, #tpu.memory_space<vmem>>, vector<1x17x32xf32>,
    return
  }
  func.func @transform_0(%arg0: i32, %arg1: i32) -> (i32, i32, i32) {
    %c0_i32 = arith.constant 0 : i32
    %c0_i32_0 = arith.constant 0 : i32
    return %arg0, %arg1, %c0_i32 : i32, i32, i32
  }
  func.func @transform_1(%arg0: i32, %arg1: i32) -> (i32, i32) {
    %c0_i32 = arith.constant 0 : i32
    %c0_i32_0 = arith.constant 0 : i32
    %c0_i32_1 = arith.constant 0 : i32
    return %c0_i32, %c0_i32_0 : i32, i32
  }
  func.func @transform_2(%arg0: i32, %arg1: i32) -> (i32, i32) {
    %c0_i32 = arith.constant 0 : i32
    %c0_i32_0 = arith.constant 0 : i32
    %c0_i32_1 = arith.constant 0 : i32
    return %c0_i32, %c0_i32_0 : i32, i32
  }
  func.func @transform_3(%arg0: i32, %arg1: i32) -> (i32, i32, i32) {
    %c0_i32 = arith.constant 0 : i32
    %c0_i32_0 = arith.constant 0 : i32
    return %arg0, %arg1, %c0_i32 : i32, i32, i32
  }
}

</mosaic_0001>

<llo_original>
// kernel: embeddings_forward.1
$region0: #{embeddings_forward.1}
  #allocation0 [shape = 'u32[]', space=smem, size = 0x4, offset = 0x4, fixed_abs, tag = 'smem constant byte address 0x4 - core index']
  #allocation1 [shape = 'u32[144,128]{1,0:T(1,128)}', space=vmem, size = 0x12000, scoped, tag = 'internal scratch']
  %s0 = inlined_call_operand.vmem [shape: bf16[2,17,64], index: 0, kind: input, shape index: {}]
  %s1 = inlined_call_operand.vmem [shape: bf16[64,32], index: 1, kind: input, shape index: {}]
  %s2 = inlined_call_operand.vmem [shape: f32[17,32], index: 2, kind: input, shape index: {}]
  %s3 = inlined_call_operand.vmem [shape: f32[2,17,32], index: 3, kind: output, shape index: {}]
  %s4 = sld [smem:[#allocation0]]
  $region22: #{embeddings_forward.1} parent=0
    _
  %s6 = ssub.s32 1, %s4
  %s7 = scalar_select 0, %s6, %s4
  // Predicated region
  $region2: #{embeddings_forward.1} parent=0 // pred_check
    _
  $region3: #{embeddings_forward.1} parent=0 // pred_check_branch
    %9 = sbr.rel (0) target = $region5
  $region4: #{embeddings_forward.1} parent=0 // pred_region
    _
  $region5: #{embeddings_forward.1} parent=0 // pred_fallthru
    _
  // Predicated region
  $region6: #{embeddings_forward.1} parent=0 // pred_check
    _
  $region7: #{embeddings_forward.1} parent=0 // pred_check_branch
    %11 = sbr.rel (0) target = $region9
  $region8: #{embeddings_forward.1} parent=0 // pred_region
    _
  $region9: #{embeddings_forward.1} parent=0 // pred_fallthru
    _
  // Predicated region
  $region10: #{embeddings_forward.1} parent=0 // pred_check
    _
  $region11: #{embeddings_forward.1} parent=0 // pred_check_branch
    %13 = sbr.rel (0) target = $region13
  $region12: #{embeddings_forward.1} parent=0 // pred_region
    _
  $region13: #{embeddings_forward.1} parent=0 // pred_fallthru
    _
  %v15 = vld [vmem:[%s2] sm:$0xff]
  %v16 = vld [vmem:[%s2 + $0x8] sm:$0xff]
  %v17 = vld [vmem:[%s2 + $0x10] sm:$0x1]
  %v18 = vld [vmem:[%s1] sm:$0xf]
  %v19 = vld [vmem:[%s1 + $0x4] sm:$0xf]
  %v20 = vld [vmem:[%s1 + $0x8] sm:$0xf]
  %v21 = vld [vmem:[%s1 + $0xc] sm:$0xf]
  %v22 = vld [vmem:[%s1 + $0x10] sm:$0xf]
  %v23 = vld [vmem:[%s1 + $0x14] sm:$0xf]
  %v24 = vld [vmem:[%s1 + $0x18] sm:$0xf]
  %v25 = vld [vmem:[%s1 + $0x1c] sm:$0xf]
  %v26 = vld [vmem:[%s0] sm:$0xf]
  %v27 = vld [vmem:[%s0 + $0x4] sm:$0xf]
  %v28 = vld [vmem:[%s0 + $0x8] sm:$0x1]
  %v32 = vunpack.c.l.b16 %v26
  %v33 = vunpack.c.l.b16 %v27
  %v34 = vunpack.c.l.b16 %v28
  %v35 = vpack.c.b16 %v33, %v32
  %v36 = vpack.c.b16 %v34, %v34
  %v45 = vunpack.c.l.b16 %v18
  %v46 = vunpack.c.l.b16 %v19
  %v47 = vunpack.c.l.b16 %v20
  %v48 = vunpack.c.l.b16 %v21
  %v49 = vunpack.c.l.b16 %v22
  %v50 = vunpack.c.l.b16 %v23
  %v51 = vunpack.c.l.b16 %v24
  %v52 = vunpack.c.l.b16 %v25
  %v53 = vpack.c.b16 %v46, %v45
  %v54 = vpack.c.b16 %v48, %v47
  %v55 = vpack.c.b16 %v50, %v49
  %v56 = vpack.c.b16 %v52, %v51
  %vm61 = vcmask 523264
  %v63 = vsel %vm61, %v35, 0
  %v66 = vsel %vm61, %v36, 0
  %68 = vmatprep.subr.bf16.mxu0 0
  %69 = vmatpush1.bf16.msra.mxu0 %v53
  %70 = vmatprep.subr.bf16.mxu0 0
  %71 = vmatpush1.bf16.msra.mxu0 %v54
  %72 = vmatprep.subr.bf16.mxu0 0
  %73 = vmatpush1.bf16.msra.mxu0 %v55
  %74 = vmatprep.subr.bf16.mxu0 0
  %75 = vmatpush1.bf16.msra.mxu0 %v56
  %76 = vmatprep.subr.bf16.mxu0 0
  %77 = vmatpush1.bf16.msra.mxu0 0
  %78 = vmatprep.subr.bf16.mxu0 0
  %79 = vmatpush1.bf16.msra.mxu0 0
  %80 = vmatprep.subr.bf16.mxu0 0
  %81 = vmatpush1.bf16.msra.mxu0 0
  %82 = vmatprep.subr.bf16.mxu0 0
  %83 = vmatpush1.bf16.msra.mxu0 0
  %84 = vmatprep.subr.bf16.mxu0 0
  %85 = vmatpush1.bf16.msra.mxu0 0
  %86 = vmatprep.subr.bf16.mxu0 0
  %87 = vmatpush1.bf16.msra.mxu0 0
  %88 = vmatprep.subr.bf16.mxu0 0
  %89 = vmatpush1.bf16.msra.mxu0 0
  %90 = vmatprep.subr.bf16.mxu0 0
  %91 = vmatpush1.bf16.msra.mxu0 0
  %92 = vmatprep.subr.bf16.mxu0 0
  %93 = vmatpush1.bf16.msra.mxu0 0
  %94 = vmatprep.subr.bf16.mxu0 0
  %95 = vmatpush1.bf16.msra.mxu0 0
  %96 = vmatprep.subr.bf16.mxu0 0
  %97 = vmatpush1.bf16.msra.mxu0 0
  %98 = vmatprep.subr.bf16.mxu0 0
  %99 = vmatpush1.bf16.msra.mxu0 0
  %100 = vmatprep.mubr.bf16.mxu0 0
  %101 = vmatmul.mubr.bf16.gmra.mrb[0].mxu0 %v63
  %v102 = vpop.f32.mrb[0].mxu0
  %v103 = vadd.f32 %v15, %v102
  %v104 = vpop.f32.mrb[0].mxu0
  %v105 = vpop.f32.mrb[0].mxu0
  %v106 = vadd.f32 %v16, %v105
  %v107 = vpop.f32.mrb[0].mxu0
  %108 = vmatprep.mubr.bf16.mxu0 0
  %109 = vmatmul.mubr.bf16.gmra.mrb[0].mxu0 %v66
  %v110 = vpop.f32.mrb[0].mxu0
  %v111 = vadd.f32 %v17, %v110
  %v112 = vpop.f32.mrb[0].mxu0
  %v113 = vpop.f32.mrb[0].mxu0
  %v114 = vpop.f32.mrb[0].mxu0
  %115 = vdwg.mxu0
  %vm116 = vcmask 261120
  %117 = vst.msk [vmem:[%s3] sm:$0xff] %vm116, %v103
  %118 = vst.msk [vmem:[%s3 + $0x8] sm:$0xff] %vm116, %v106
  %vm119 = vcmask 253952
  %120 = vst.msk [vmem:[%s3 + $0x10] sm:$0x1] %vm119, %v111
  %s121 = scalar_lea.vmem %s0, 12
  %v122 = vld [vmem:[%s121] sm:$0xf]
  %v123 = vld [vmem:[%s121 + $0x4] sm:$0xf]
  %v124 = vld [vmem:[%s121 + $0x8] sm:$0x1]
  %v128 = vunpack.c.l.b16 %v122
  %v129 = vunpack.c.l.b16 %v123
  %v130 = vunpack.c.l.b16 %v124
  %v131 = vpack.c.b16 %v129, %v128
  %v132 = vpack.c.b16 %v130, %v130
  %v134 = vsel %vm61, %v131, 0
  %v137 = vsel %vm61, %v132, 0
  %139 = vmatprep.subr.bf16.mxu0 0
  %140 = vmatpush1.bf16.msra.mxu0 %v53
  %141 = vmatprep.subr.bf16.mxu0 0
  %142 = vmatpush1.bf16.msra.mxu0 %v54
  %143 = vmatprep.subr.bf16.mxu0 0
  %144 = vmatpush1.bf16.msra.mxu0 %v55
  %145 = vmatprep.subr.bf16.mxu0 0
  %146 = vmatpush1.bf16.msra.mxu0 %v56
  %147 = vmatprep.subr.bf16.mxu0 0
  %148 = vmatpush1.bf16.msra.mxu0 0
  %149 = vmatprep.subr.bf16.mxu0 0
  %150 = vmatpush1.bf16.msra.mxu0 0
  %151 = vmatprep.subr.bf16.mxu0 0
  %152 = vmatpush1.bf16.msra.mxu0 0
  %153 = vmatprep.subr.bf16.mxu0 0
  %154 = vmatpush1.bf16.msra.mxu0 0
  %155 = vmatprep.subr.bf16.mxu0 0
  %156 = vmatpush1.bf16.msra.mxu0 0
  %157 = vmatprep.subr.bf16.mxu0 0
  %158 = vmatpush1.bf16.msra.mxu0 0
  %159 = vmatprep.subr.bf16.mxu0 0
  %160 = vmatpush1.bf16.msra.mxu0 0
  %161 = vmatprep.subr.bf16.mxu0 0
  %162 = vmatpush1.bf16.msra.mxu0 0
  %163 = vmatprep.subr.bf16.mxu0 0
  %164 = vmatpush1.bf16.msra.mxu0 0
  %165 = vmatprep.subr.bf16.mxu0 0
  %166 = vmatpush1.bf16.msra.mxu0 0
  %167 = vmatprep.subr.bf16.mxu0 0
  %168 = vmatpush1.bf16.msra.mxu0 0
  %169 = vmatprep.subr.bf16.mxu0 0
  %170 = vmatpush1.bf16.msra.mxu0 0
  %171 = vmatprep.mubr.bf16.mxu0 0
  %172 = vmatmul.mubr.bf16.gmra.mrb[0].mxu0 %v134
  %v173 = vpop.f32.mrb[0].mxu0
  %v174 = vadd.f32 %v15, %v173
  %v175 = vpop.f32.mrb[0].mxu0
  %v176 = vpop.f32.mrb[0].mxu0
  %v177 = vadd.f32 %v16, %v176
  %v178 = vpop.f32.mrb[0].mxu0
  %179 = vmatprep.mubr.bf16.mxu0 0
  %180 = vmatmul.mubr.bf16.gmra.mrb[0].mxu0 %v137
  %v181 = vpop.f32.mrb[0].mxu0
  %v182 = vadd.f32 %v17, %v181
  %v183 = vpop.f32.mrb[0].mxu0
  %v184 = vpop.f32.mrb[0].mxu0
  %v185 = vpop.f32.mrb[0].mxu0
  %186 = vdwg.mxu0
  %s187 = scalar_lea.vmem %s3, 24
  %188 = vst.msk [vmem:[%s187] sm:$0xff] %vm116, %v174
  %189 = vst.msk [vmem:[%s187 + $0x8] sm:$0xff] %vm116, %v177
  %190 = vst.msk [vmem:[%s187 + $0x10] sm:$0x1] %vm119, %v182
  // Predicated region
  $region14: #{embeddings_forward.1} parent=0 // pred_check
    _
  $region15: #{embeddings_forward.1} parent=0 // pred_check_branch
    %192 = sbr.rel (0) target = $region17
  $region16: #{embeddings_forward.1} parent=0 // pred_region
    _
  $region17: #{embeddings_forward.1} parent=0 // pred_fallthru
    _
  // Predicated region
  $region18: #{embeddings_forward.1} parent=0 // pred_check
    _
  $region19: #{embeddings_forward.1} parent=0 // pred_check_branch
    %194 = sbr.rel (0) target = $region21
  $region20: #{embeddings_forward.1} parent=0 // pred_region
    _
  $region21: #{embeddings_forward.1} parent=0 // pred_fallthru
    _

</llo_original>
